<compile_context>
chip_gen: v6e
topology: v6e:2x2x1
jax: 0.10.0
libtpu: 0.0.40
codegen_flags: <defaults>
</compile_context>

<pallas_src>
import functools

import jax
import jax.numpy as jnp
from jax.experimental import pallas as pl
from jax.experimental.pallas import tpu as pltpu


_LANE = 128     # last-dim (lane) granularity
_SUBLANE = 8    # second-to-last-dim (sublane) granularity for f32


def _round_up(x, m):
    return (x + m - 1) // m * m


def _matmul_kernel(x_ref, w_ref, o_ref):
    # One MXU dot per grid point, accumulated in f32.
    o_ref[...] = jnp.dot(
        x_ref[...], w_ref[...], preferred_element_type=jnp.float32
    ).astype(o_ref.dtype)


@functools.lru_cache(maxsize=None)
def _build_matmul(mp, kp, npad, bm, bn, dtype_name):
    """Build (and cache) the pallas_call for a padded (mp,kp)x(kp,npad) matmul."""
    dtype = jnp.dtype(dtype_name)
    itemsize = dtype.itemsize
    grid = (npad // bn, mp // bm)   # dim-tiles outer, row-tiles inner:
                                    # weight tile stays resident across rows.

    # Double-buffered input tiles + output tile, plus slack.
    vmem_needed = 2 * (bm * kp * itemsize + kp * bn * itemsize + bm * bn * 4) + (1 << 20)
    vmem_limit = min(max(vmem_needed, 16 << 20), 64 << 20)  # stay inside v7x's 64 MiB

    cost = pl.CostEstimate(
        flops=2 * mp * kp * npad,
        transcendentals=0,
        bytes_accessed=(mp * kp * itemsize * (npad // bn)   # x refetched per dim-tile
                        + kp * npad * itemsize               # weight streamed once
                        + mp * npad * 4),                    # f32 output
    )

    return pl.pallas_call(
        _matmul_kernel,
        out_shape=jax.ShapeDtypeStruct((mp, npad), jnp.float32),
        grid_spec=pltpu.PrefetchScalarGridSpec(
            num_scalar_prefetch=0,
            grid=grid,
            in_specs=[
                pl.BlockSpec((bm, kp), lambda j, i: (i, 0)),   # activations
                pl.BlockSpec((kp, bn), lambda j, i: (0, j)),   # weight (K resident)
            ],
            out_specs=pl.BlockSpec((bm, bn), lambda j, i: (i, j)),
        ),
        compiler_params=pltpu.CompilerParams(
            dimension_semantics=("parallel", "parallel"),
            vmem_limit_bytes=vmem_limit,
        ),
        cost_estimate=cost,
    )


def _pallas_matmul(x, w, compute_dtype):
    """x:(M,A) @ w:(A,D) -> (M,D) f32, via a lane/sublane-padded Pallas matmul."""
    m, k = x.shape
    k2, n = w.shape
    assert k == k2

    # Tile sizes: 256-aligned when the problem is big enough (full MXU push on
    # v6e/v7x), otherwise the smallest legal (8,128)-aligned full-extent block.
    bm = 256 if m >= 256 else _round_up(max(m, 1), _SUBLANE)
    bn = 256 if n >= 256 else _round_up(max(n, 1), _LANE)
    mp = _round_up(m, bm)
    npad = _round_up(n, bn)
    kp = _round_up(k, _LANE)

    xp = x.astype(compute_dtype)
    wp = w.astype(compute_dtype)
    if (mp, kp) != (m, k):
        xp = jnp.pad(xp, ((0, mp - m), (0, kp - k)))
    if (kp, npad) != (k, n):
        wp = jnp.pad(wp, ((0, kp - k), (0, npad - n)))

    call = _build_matmul(mp, kp, npad, bm, bn, str(jnp.dtype(compute_dtype)))
    out = call(xp, wp)
    if (mp, npad) != (m, n):
        out = out[:m, :n]
    return out


@functools.partial(jax.jit, static_argnames=("compute_dtype",))
def link_transform_forward(weight, oov, activation=None, compute_dtype=jnp.float32):
    """Module-faithful LinkTransform.forward.

    weight : (activation_size, dim) float32
    oov    : (1, activation_size)   float32
    activation : optional; None -> oov.  Leading dim != 1 -> reshape(1, -1).
    compute_dtype : matmul input dtype (jnp.float32 exact, jnp.bfloat16 to
                    halve weight DMA on v5e/v6e; accumulation is always f32).
    """
    if activation is None:
        activation = oov
    if activation.shape[0] != 1:
        activation = activation.reshape(1, -1)
    a_size, dim = weight.shape
    assert activation.shape == (1, a_size)
    return _pallas_matmul(activation, weight, compute_dtype)


@functools.partial(jax.jit, static_argnames=("compute_dtype",))
def link_transform_forward_batched(weight, oov, activations, compute_dtype=jnp.float32):
    """Throughput extension: (N, activation_size) -> (N, dim) in ONE pallas_call.

    Equivalent to stacking N independent calls of the module's forward (one per
    row); amortizes launch overhead and the weight DMA across all rows.
    """
    del oov  # only used by the None path of the module-faithful forward
    a_size, dim = weight.shape
    assert activations.ndim == 2 and activations.shape[1] == a_size
    return _pallas_matmul(activations, weight, compute_dtype)


def init_link_transform_params(key, activation_size, dim, stddev=0.1):
    """Deterministic synthetic parameters matching LinkTransform.__init__/init."""
    k_w, k_oov = jax.random.split(key)
    weight = jax.random.normal(k_w, (activation_size, dim), jnp.float32) * stddev
    oov = jax.random.normal(k_oov, (1, activation_size), jnp.float32) * stddev
    return weight, oov


if __name__ == "__main__":
    activation_size = 32
    dim = 16

    key = jax.random.PRNGKey(0)
    k_params, k_act, k_batch = jax.random.split(key, 3)

    weight, oov = init_link_transform_params(k_params, activation_size, dim, stddev=0.1)

    # Case 1: explicit activation of shape (1, activation_size).
    activation = jax.random.normal(k_act, (1, activation_size), jnp.float32)
    out1 = jax.block_until_ready(link_transform_forward(weight, oov, activation))

    # Case 2: activation=None -> uses the oov vector.
    out2 = jax.block_until_ready(link_transform_forward(weight, oov, None))

    # Case 3: batched extension (8 link features share the same weight).
    batch = jax.random.normal(k_batch, (8, activation_size), jnp.float32)
    out3 = jax.block_until_ready(link_transform_forward_batched(weight, oov, batch))

    # Case 4: bf16 compute path (f32 accumulation) on the batched call.
    out4 = jax.block_until_ready(
        link_transform_forward_batched(weight, oov, batch, compute_dtype=jnp.bfloat16)
    )

    # Reference checks (plain JAX).
    ref1 = activation @ weight
    ref2 = oov @ weight
    ref3 = batch @ weight
    ref4 = (batch.astype(jnp.bfloat16) @ weight.astype(jnp.bfloat16)).astype(jnp.float32)

    assert out1.shape == (1, dim) and out2.shape == (1, dim)
    assert out3.shape == (8, dim) and out4.shape == (8, dim)
    assert jnp.allclose(out1, ref1, atol=1e-5, rtol=1e-5)
    assert jnp.allclose(out2, ref2, atol=1e-5, rtol=1e-5)
    assert jnp.allclose(out3, ref3, atol=1e-5, rtol=1e-5)
    assert jnp.allclose(out4, ref4, atol=2e-2, rtol=2e-2)

    print("KERNEL_OK")
</pallas_src>

<mosaic_0001>
module attributes {stable_mosaic.version = 11 : i64} {
  func.func @_matmul_kernel(%arg0: i32, %arg1: i32, %arg2: memref<8x128xf32, #tpu.memory_space<vmem>>, %arg3: memref<128x128xf32, #tpu.memory_space<vmem>>, %arg4: memref<8x128xf32, #tpu.memory_space<vmem>>) attributes {dimension_semantics = [#tpu.dimension_semantics<parallel>, #tpu.dimension_semantics<parallel>], iteration_bounds = array<i64: 1, 1>, scalar_prefetch = 0 : i64, scratch_operands = 0 : i64, tpu.core_type = #tpu.core_type<tc>, window_params = [{transform_indices = @transform_0, window_bounds = array<i64: 8, 128>}, {transform_indices = @transform_1, window_bounds = array<i64: 128, 128>}, {transform_indices = @transform_2, window_bounds = array<i64: 8, 128>}]} {
    %c0 = arith.constant 0 : index
    %c0_0 = arith.constant 0 : index
    %0 = vector.load %arg2[%c0, %c0_0] : memref<8x128xf32, #tpu.memory_space<vmem>>, vector<8x128xf32>
    %c0_1 = arith.constant 0 : index
    %c0_2 = arith.constant 0 : index
    %1 = vector.load %arg3[%c0_1, %c0_2] : memref<128x128xf32, #tpu.memory_space<vmem>>, vector<128x128xf32>
    %cst = arith.constant dense<0.000000e+00> : vector<8x128xf32>
    %2 = tpu.matmul %0, %1, %cst {dimension_numbers = #tpu.dot_dimension_numbers<[1], [0], [0], [1], [0, 0, 1, 1], [], []>} : vector<8x128xf32>, vector<128x128xf32>, vector<8x128xf32> -> vector<8x128xf32>
    %c0_3 = arith.constant 0 : index
    %c0_4 = arith.constant 0 : index
    %3 = vector.load %arg4[%c0_3, %c0_4] : memref<8x128xf32, #tpu.memory_space<vmem>>, vector<8x128xf32>
    tpu.vector_store %arg4[%c0_3, %c0_4], %2 {strides = array<i32>} : memref<8x128xf32, #tpu.memory_space<vmem>>, vector<8x128xf32>,
    return
  }
  func.func @transform_0(%arg0: i32, %arg1: i32) -> (i32, i32) {
    %c0_i32 = arith.constant 0 : i32
    %c0_i32_0 = arith.constant 0 : i32
    return %arg1, %c0_i32 : i32, i32
  }
  func.func @transform_1(%arg0: i32, %arg1: i32) -> (i32, i32) {
    %c0_i32 = arith.constant 0 : i32
    %c0_i32_0 = arith.constant 0 : i32
    return %c0_i32, %arg0 : i32, i32
  }
  func.func @transform_2(%arg0: i32, %arg1: i32) -> (i32, i32) {
    %c0_i32 = arith.constant 0 : i32
    return %arg1, %arg0 : i32, i32
  }
}

</mosaic_0001>

<llo_original>
// kernel: link_transform_forward.1
$region0: #{link_transform_forward.1}
  #allocation0 [shape = 'u32[]', space=smem, size = 0x4, offset = 0x4, fixed_abs, tag = 'smem constant byte address 0x4 - core index']
  #allocation1 [shape = 'u32[144,128]{1,0:T(1,128)}', space=vmem, size = 0x12000, scoped, tag = 'internal scratch']
  %s0 = inlined_call_operand.vmem [shape: f32[8,128], index: 0, kind: input, shape index: {}]
  %s1 = inlined_call_operand.vmem [shape: f32[128,128], index: 1, kind: input, shape index: {}]
  %s2 = inlined_call_operand.vmem [shape: f32[8,128], index: 2, kind: output, shape index: {}]
  %s3 = sld [smem:[#allocation0]]
  $region18: #{link_transform_forward.1} parent=0
    _
  %s5 = ssub.s32 1, %s3
  %s6 = scalar_select 0, %s5, %s3
  // Predicated region
  $region2: #{link_transform_forward.1} parent=0 // pred_check
    _
  $region3: #{link_transform_forward.1} parent=0 // pred_check_branch
    %8 = sbr.rel (0) target = $region5
  $region4: #{link_transform_forward.1} parent=0 // pred_region
    _
  $region5: #{link_transform_forward.1} parent=0 // pred_fallthru
    _
  // Predicated region
  $region6: #{link_transform_forward.1} parent=0 // pred_check
    _
  $region7: #{link_transform_forward.1} parent=0 // pred_check_branch
    %10 = sbr.rel (0) target = $region9
  $region8: #{link_transform_forward.1} parent=0 // pred_region
    _
  $region9: #{link_transform_forward.1} parent=0 // pred_fallthru
    _
  %v11 = vld [vmem:[%s0] sm:$0xff]
  %v12 = vld [vmem:[%s1] sm:$0xff]
  %v13 = vld [vmem:[%s1 + $0x8] sm:$0xff]
  %v14 = vld [vmem:[%s1 + $0x10] sm:$0xff]
  %v15 = vld [vmem:[%s1 + $0x18] sm:$0xff]
  %v16 = vld [vmem:[%s1 + $0x20] sm:$0xff]
  %v17 = vld [vmem:[%s1 + $0x28] sm:$0xff]
  %v18 = vld [vmem:[%s1 + $0x30] sm:$0xff]
  %v19 = vld [vmem:[%s1 + $0x38] sm:$0xff]
  %v20 = vld [vmem:[%s1 + $0x40] sm:$0xff]
  %v21 = vld [vmem:[%s1 + $0x48] sm:$0xff]
  %v22 = vld [vmem:[%s1 + $0x50] sm:$0xff]
  %v23 = vld [vmem:[%s1 + $0x58] sm:$0xff]
  %v24 = vld [vmem:[%s1 + $0x60] sm:$0xff]
  %v25 = vld [vmem:[%s1 + $0x68] sm:$0xff]
  %v26 = vld [vmem:[%s1 + $0x70] sm:$0xff]
  %v27 = vld [vmem:[%s1 + $0x78] sm:$0xff]
  %28 = vmatprep.subr.mxu0 0.0
  %29 = vmatpush1.msra.mxu0 %v27
  %30 = vmatprep.subr.mxu0 0.0
  %31 = vmatpush1.msra.mxu0 %v26
  %32 = vmatprep.subr.mxu0 0.0
  %33 = vmatpush1.msra.mxu0 %v25
  %34 = vmatprep.subr.mxu0 0.0
  %35 = vmatpush1.msra.mxu0 %v24
  %36 = vmatprep.subr.mxu0 0.0
  %37 = vmatpush1.msra.mxu0 %v23
  %38 = vmatprep.subr.mxu0 0.0
  %39 = vmatpush1.msra.mxu0 %v22
  %40 = vmatprep.subr.mxu0 0.0
  %41 = vmatpush1.msra.mxu0 %v21
  %42 = vmatprep.subr.mxu0 0.0
  %43 = vmatpush1.msra.mxu0 %v20
  %44 = vmatprep.subr.mxu0 0.0
  %45 = vmatpush1.msra.mxu0 %v19
  %46 = vmatprep.subr.mxu0 0.0
  %47 = vmatpush1.msra.mxu0 %v18
  %48 = vmatprep.subr.mxu0 0.0
  %49 = vmatpush1.msra.mxu0 %v17
  %50 = vmatprep.subr.mxu0 0.0
  %51 = vmatpush1.msra.mxu0 %v16
  %52 = vmatprep.subr.mxu0 0.0
  %53 = vmatpush1.msra.mxu0 %v15
  %54 = vmatprep.subr.mxu0 0.0
  %55 = vmatpush1.msra.mxu0 %v14
  %56 = vmatprep.subr.mxu0 0.0
  %57 = vmatpush1.msra.mxu0 %v13
  %58 = vmatprep.subr.mxu0 0.0
  %59 = vmatpush1.msra.mxu0 %v12
  %60 = vmatprep.subr.mxu0 0.0
  %61 = vmatpush2.msra.mxu0 0.0
  %62 = vmatprep.subr.mxu0 0.0
  %63 = vmatpush2.msra.mxu0 0.0
  %64 = vmatprep.subr.mxu0 0.0
  %65 = vmatpush2.msra.mxu0 0.0
  %66 = vmatprep.subr.mxu0 0.0
  %67 = vmatpush2.msra.mxu0 0.0
  %68 = vmatprep.subr.mxu0 0.0
  %69 = vmatpush2.msra.mxu0 0.0
  %70 = vmatprep.subr.mxu0 0.0
  %71 = vmatpush2.msra.mxu0 0.0
  %72 = vmatprep.subr.mxu0 0.0
  %73 = vmatpush2.msra.mxu0 0.0
  %74 = vmatprep.subr.mxu0 0.0
  %75 = vmatpush2.msra.mxu0 0.0
  %76 = vmatprep.subr.mxu0 0.0
  %77 = vmatpush2.msra.mxu0 0.0
  %78 = vmatprep.subr.mxu0 0.0
  %79 = vmatpush2.msra.mxu0 0.0
  %80 = vmatprep.subr.mxu0 0.0
  %81 = vmatpush2.msra.mxu0 0.0
  %82 = vmatprep.subr.mxu0 0.0
  %83 = vmatpush2.msra.mxu0 0.0
  %84 = vmatprep.subr.mxu0 0.0
  %85 = vmatpush2.msra.mxu0 0.0
  %86 = vmatprep.subr.mxu0 0.0
  %87 = vmatpush2.msra.mxu0 0.0
  %88 = vmatprep.subr.mxu0 0.0
  %89 = vmatpush2.msra.mxu0 0.0
  %90 = vmatprep.subr.mxu0 0.0
  %91 = vmatpush2.msra.mxu0 0.0
  %92 = vmatprep.mubr.f32.mxu0 0.0
  %93 = vmatmul.mubr.f32.gmra.mxu0 %v11
  %v94 = vpop.f32.mrf.mxu0
  %v95 = vadd.f32 0.0, %v94
  %v96 = vpop.f32.mrf.mxu0
  %97 = vdwg.mxu0
  %98 = vst [vmem:[%s2] sm:$0xff] %v95
  // Predicated region
  $region10: #{link_transform_forward.1} parent=0 // pred_check
    _
  $region11: #{link_transform_forward.1} parent=0 // pred_check_branch
    %100 = sbr.rel (0) target = $region13
  $region12: #{link_transform_forward.1} parent=0 // pred_region
    _
  $region13: #{link_transform_forward.1} parent=0 // pred_fallthru
    _
  // Predicated region
  $region14: #{link_transform_forward.1} parent=0 // pred_check
    _
  $region15: #{link_transform_forward.1} parent=0 // pred_check_branch
    %102 = sbr.rel (0) target = $region17
  $region16: #{link_transform_forward.1} parent=0 // pred_region
    _
  $region17: #{link_transform_forward.1} parent=0 // pred_fallthru
    _

</llo_original>
